<compile_context>
chip_gen: v7x
topology: tpu7x:2x2x1
jax: 0.10.0
libtpu: 0.0.40
codegen_flags: <defaults>
</compile_context>

<pallas_src>
import functools

import jax
import jax.numpy as jnp
import numpy as np
from jax.experimental import pallas as pl
from jax.experimental.pallas import tpu as pltpu


# ----------------------------- weight builders ------------------------------
def _bilinear_weight_matrix(out_size: int, in_size: int) -> np.ndarray:
    """(out_size, in_size) matrix replicating PyTorch bilinear, align_corners=False."""
    scale = in_size / out_size
    j = np.arange(out_size, dtype=np.float64)
    src = (j + 0.5) * scale - 0.5
    src = np.maximum(src, 0.0)                      # PyTorch clamps negative src to 0
    i0 = np.floor(src).astype(np.int64)
    i0 = np.minimum(i0, in_size - 1)
    i1 = np.minimum(i0 + 1, in_size - 1)
    lam = src - i0
    w = np.zeros((out_size, in_size), dtype=np.float64)
    w[np.arange(out_size), i0] += (1.0 - lam)
    w[np.arange(out_size), i1] += lam
    return w.astype(np.float32)


def _nearest_weight_matrix(out_size: int, in_size: int) -> np.ndarray:
    """(out_size, in_size) 0/1 matrix replicating PyTorch 'nearest' (asymmetric floor)."""
    scale = in_size / out_size
    j = np.arange(out_size, dtype=np.float64)
    src = np.minimum(np.floor(j * scale).astype(np.int64), in_size - 1)
    w = np.zeros((out_size, in_size), dtype=np.float32)
    w[np.arange(out_size), src] = 1.0
    return w


# --------------------------------- kernel -----------------------------------
def _mixupsample_kernel(x_ref, wcat_ref, wrow_ref, o_ref):
    # x_ref block : (B, H_in, W_in)
    # wcat_ref    : (W_in, 2*W_out)   = [WwbT | WwnT]
    # wrow_ref    : (H_out, 2*H_in)   = [m*Whb | (1-m)*Whn]  (mixing pre-folded)
    # o_ref block : (B, H_out, W_out)
    b, h_in, w_in = x_ref.shape
    _, h_out, w_out = o_ref.shape

    # Stage 1: one big lane-dense matmul, M = B*H_in, N = 2*W_out.
    x2 = x_ref[...].reshape(b * h_in, w_in)
    t = jnp.dot(x2, wcat_ref[...], preferred_element_type=jnp.float32)  # (B*H_in, 2*W_out)
    t = t.reshape(b, h_in, 2 * w_out)

    # Stack the bilinear / nearest halves along the row (sublane) axis so stage 2
    # is a single matmul per slab with K = 2*H_in.
    stacked = jnp.concatenate([t[:, :, :w_out], t[:, :, w_out:]], axis=1)  # (B, 2*H_in, W_out)

    wrow = wrow_ref[...]                                                   # (H_out, 2*H_in)
    for s in range(b):  # b is static, small -> unrolled
        o_ref[s] = jnp.dot(wrow, stacked[s], preferred_element_type=jnp.float32)


# -------------------------------- wrapper -----------------------------------
@functools.partial(jax.jit, static_argnames=("originalshape",))
def mixupsample_2(x, mixing, originalshape):
    """x: (N, C, H_in, W_in) float32. mixing: scalar. originalshape: (H_out, W_out)."""
    n, c, h_in, w_in = x.shape
    h_out, w_out = originalshape

    whb = jnp.asarray(_bilinear_weight_matrix(h_out, h_in))   # (H_out, H_in)
    wwb = jnp.asarray(_bilinear_weight_matrix(w_out, w_in))   # (W_out, W_in)
    whn = jnp.asarray(_nearest_weight_matrix(h_out, h_in))    # (H_out, H_in)
    wwn = jnp.asarray(_nearest_weight_matrix(w_out, w_in))    # (W_out, W_in)

    # Fold the (traced) mixing scalar into the tiny row-weight matrices under jit.
    m = jnp.asarray(mixing, jnp.float32)
    wrow = jnp.concatenate([m * whb, (1.0 - m) * whn], axis=1)   # (H_out, 2*H_in)
    wcat = jnp.concatenate([wwb.T, wwn.T], axis=1)               # (W_in, 2*W_out)

    nc = n * c
    x_flat = x.reshape(nc, h_in, w_in).astype(jnp.float32)

    # Choose slabs-per-step B: batch aggressively (big-M stage-1 matmul, few grid
    # steps) but stay inside a conservative VMEM budget (double-buffered in/out)
    # and, when possible, keep >=2 parallel grid steps so both v7x cores get work.
    bytes_per_slab = 4 * (h_in * w_in + h_out * w_out)
    vmem_budget = 12 * 1024 * 1024
    b = max(1, min(16, nc, vmem_budget // (2 * bytes_per_slab)))
    if nc > 1:
        b = max(1, min(b, pl.cdiv(nc, 2)))

    num_steps = pl.cdiv(nc, b)
    nc_pad = num_steps * b
    if nc_pad != nc:
        x_flat = jnp.pad(x_flat, ((0, nc_pad - nc), (0, 0), (0, 0)))

    # TODO(synk): if the real deployment has w_out < 128, pack two slabs along the
    # last output dim for lane-dense stores (not needed for correctness).
    out_flat = pl.pallas_call(
        _mixupsample_kernel,
        out_shape=jax.ShapeDtypeStruct((nc_pad, h_out, w_out), jnp.float32),
        grid=(num_steps,),
        in_specs=[
            pl.BlockSpec((b, h_in, w_in), lambda i: (i, 0, 0)),       # x slabs
            pl.BlockSpec((w_in, 2 * w_out), lambda i: (0, 0)),        # [WwbT | WwnT]
            pl.BlockSpec((h_out, 2 * h_in), lambda i: (0, 0)),        # [m*Whb | (1-m)*Whn]
        ],
        out_specs=pl.BlockSpec((b, h_out, w_out), lambda i: (i, 0, 0)),
        compiler_params=pltpu.CompilerParams(dimension_semantics=("parallel",)),
    )(x_flat, wcat, wrow)

    return out_flat[:nc].reshape(n, c, h_out, w_out)


# ------------------------------- reference ----------------------------------
def _reference(x, mixing, originalshape):
    n, c, h_in, w_in = x.shape
    h_out, w_out = originalshape
    whb = jnp.asarray(_bilinear_weight_matrix(h_out, h_in))
    wwb = jnp.asarray(_bilinear_weight_matrix(w_out, w_in))
    whn = jnp.asarray(_nearest_weight_matrix(h_out, h_in))
    wwn = jnp.asarray(_nearest_weight_matrix(w_out, w_in))
    bi = jnp.einsum("oh,nchw,pw->ncop", whb, x, wwb)
    nn = jnp.einsum("oh,nchw,pw->ncop", whn, x, wwn)
    return mixing * bi + (1.0 - mixing) * nn


if __name__ == "__main__":
    key = jax.random.PRNGKey(0)
    # nn.Parameter(torch.tensor(0.5)) -> deterministic scalar mixing parameter.
    mixing = jnp.asarray(0.5, dtype=jnp.float32)
    scale_factor = 4

    x = jax.random.normal(key, (2, 4, 16, 16), dtype=jnp.float32)
    originalshape = (16 * scale_factor, 16 * scale_factor)          # (64, 64)

    out = mixupsample_2(x, mixing, originalshape)
    out = jax.block_until_ready(out)

    ref = _reference(x, mixing, originalshape)
    assert out.shape == (2, 4, 64, 64), out.shape
    np.testing.assert_allclose(np.asarray(out), np.asarray(ref), rtol=1e-5, atol=1e-5)

    print("KERNEL_OK")
</pallas_src>

<mosaic_0001>
module attributes {stable_mosaic.version = 11 : i64} {
  func.func @_mixupsample_kernel(%arg0: i32, %arg1: memref<4x16x16xf32, #tpu.memory_space<vmem>>, %arg2: memref<16x128xf32, #tpu.memory_space<vmem>>, %arg3: memref<64x32xf32, #tpu.memory_space<vmem>>, %arg4: memref<4x64x64xf32, #tpu.memory_space<vmem>>) attributes {dimension_semantics = [#tpu.dimension_semantics<parallel>], iteration_bounds = array<i64: 2>, scalar_prefetch = 0 : i64, scratch_operands = 0 : i64, tpu.core_type = #tpu.core_type<tc>, window_params = [{transform_indices = @transform_0, window_bounds = array<i64: 4, 16, 16>}, {pipeline_mode = #tpu.pipeline_mode<synchronous>, transform_indices = @transform_1, window_bounds = array<i64: 16, 128>}, {pipeline_mode = #tpu.pipeline_mode<synchronous>, transform_indices = @transform_2, window_bounds = array<i64: 64, 32>}, {transform_indices = @transform_3, window_bounds = array<i64: 4, 64, 64>}]} {
    %c0 = arith.constant 0 : index
    %c0_0 = arith.constant 0 : index
    %c0_1 = arith.constant 0 : index
    %0 = vector.load %arg1[%c0, %c0_0, %c0_1] : memref<4x16x16xf32, #tpu.memory_space<vmem>>, vector<4x16x16xf32>
    %1 = vector.shape_cast %0 : vector<4x16x16xf32> to vector<64x16xf32>
    %c0_2 = arith.constant 0 : index
    %c0_3 = arith.constant 0 : index
    %2 = vector.load %arg2[%c0_2, %c0_3] : memref<16x128xf32, #tpu.memory_space<vmem>>, vector<16x128xf32>
    %cst = arith.constant dense<0.000000e+00> : vector<64x128xf32>
    %3 = tpu.matmul %1, %2, %cst {dimension_numbers = #tpu.dot_dimension_numbers<[1], [0], [0], [1], [0, 0, 1, 1], [], []>} : vector<64x16xf32>, vector<16x128xf32>, vector<64x128xf32> -> vector<64x128xf32>
    %4 = vector.shape_cast %3 : vector<64x128xf32> to vector<4x16x128xf32>
    %5 = vector.extract_strided_slice %4 {offsets = [0, 0, 0], sizes = [4, 16, 64], strides = [1, 1, 1]} : vector<4x16x128xf32> to vector<4x16x64xf32>
    %6 = vector.extract_strided_slice %4 {offsets = [0, 0, 64], sizes = [4, 16, 64], strides = [1, 1, 1]} : vector<4x16x128xf32> to vector<4x16x64xf32>
    %7 = tpu.concatenate %5, %6 in 1 : vector<4x16x64xf32>, vector<4x16x64xf32> -> vector<4x32x64xf32>
    %c0_4 = arith.constant 0 : index
    %c0_5 = arith.constant 0 : index
    %8 = vector.load %arg3[%c0_4, %c0_5] : memref<64x32xf32, #tpu.memory_space<vmem>>, vector<64x32xf32>
    %9 = vector.extract_strided_slice %7 {offsets = [0, 0, 0], sizes = [1, 32, 64], strides = [1, 1, 1]} : vector<4x32x64xf32> to vector<1x32x64xf32>
    %10 = vector.shape_cast %9 : vector<1x32x64xf32> to vector<32x64xf32>
    %cst_6 = arith.constant dense<0.000000e+00> : vector<64x64xf32>
    %11 = tpu.matmul %8, %10, %cst_6 {dimension_numbers = #tpu.dot_dimension_numbers<[1], [0], [0], [1], [0, 0, 1, 1], [], []>} : vector<64x32xf32>, vector<32x64xf32>, vector<64x64xf32> -> vector<64x64xf32>
    %c0_7 = arith.constant 0 : index
    %c0_8 = arith.constant 0 : index
    %c0_9 = arith.constant 0 : index
    %12 = vector.load %arg4[%c0_7, %c0_8, %c0_9] : memref<4x64x64xf32, #tpu.memory_space<vmem>>, vector<1x64x64xf32>
    %13 = vector.shape_cast %12 : vector<1x64x64xf32> to vector<64x64xf32>
    %14 = vector.shape_cast %11 : vector<64x64xf32> to vector<1x64x64xf32>
    tpu.vector_store %arg4[%c0_7, %c0_8, %c0_9], %14 {strides = array<i32>} : memref<4x64x64xf32, #tpu.memory_space<vmem>>, vector<1x64x64xf32>,
    %15 = vector.extract_strided_slice %7 {offsets = [1, 0, 0], sizes = [1, 32, 64], strides = [1, 1, 1]} : vector<4x32x64xf32> to vector<1x32x64xf32>
    %16 = vector.shape_cast %15 : vector<1x32x64xf32> to vector<32x64xf32>
    %cst_10 = arith.constant dense<0.000000e+00> : vector<64x64xf32>
    %17 = tpu.matmul %8, %16, %cst_10 {dimension_numbers = #tpu.dot_dimension_numbers<[1], [0], [0], [1], [0, 0, 1, 1], [], []>} : vector<64x32xf32>, vector<32x64xf32>, vector<64x64xf32> -> vector<64x64xf32>
    %c1 = arith.constant 1 : index
    %c0_11 = arith.constant 0 : index
    %c0_12 = arith.constant 0 : index
    %18 = vector.load %arg4[%c1, %c0_11, %c0_12] : memref<4x64x64xf32, #tpu.memory_space<vmem>>, vector<1x64x64xf32>
    %19 = vector.shape_cast %18 : vector<1x64x64xf32> to vector<64x64xf32>
    %20 = vector.shape_cast %17 : vector<64x64xf32> to vector<1x64x64xf32>
    tpu.vector_store %arg4[%c1, %c0_11, %c0_12], %20 {strides = array<i32>} : memref<4x64x64xf32, #tpu.memory_space<vmem>>, vector<1x64x64xf32>,
    %21 = vector.extract_strided_slice %7 {offsets = [2, 0, 0], sizes = [1, 32, 64], strides = [1, 1, 1]} : vector<4x32x64xf32> to vector<1x32x64xf32>
    %22 = vector.shape_cast %21 : vector<1x32x64xf32> to vector<32x64xf32>
    %cst_13 = arith.constant dense<0.000000e+00> : vector<64x64xf32>
    %23 = tpu.matmul %8, %22, %cst_13 {dimension_numbers = #tpu.dot_dimension_numbers<[1], [0], [0], [1], [0, 0, 1, 1], [], []>} : vector<64x32xf32>, vector<32x64xf32>, vector<64x64xf32> -> vector<64x64xf32>
    %c2 = arith.constant 2 : index
    %c0_14 = arith.constant 0 : index
    %c0_15 = arith.constant 0 : index
    %24 = vector.load %arg4[%c2, %c0_14, %c0_15] : memref<4x64x64xf32, #tpu.memory_space<vmem>>, vector<1x64x64xf32>
    %25 = vector.shape_cast %24 : vector<1x64x64xf32> to vector<64x64xf32>
    %26 = vector.shape_cast %23 : vector<64x64xf32> to vector<1x64x64xf32>
    tpu.vector_store %arg4[%c2, %c0_14, %c0_15], %26 {strides = array<i32>} : memref<4x64x64xf32, #tpu.memory_space<vmem>>, vector<1x64x64xf32>,
    %27 = vector.extract_strided_slice %7 {offsets = [3, 0, 0], sizes = [1, 32, 64], strides = [1, 1, 1]} : vector<4x32x64xf32> to vector<1x32x64xf32>
    %28 = vector.shape_cast %27 : vector<1x32x64xf32> to vector<32x64xf32>
    %cst_16 = arith.constant dense<0.000000e+00> : vector<64x64xf32>
    %29 = tpu.matmul %8, %28, %cst_16 {dimension_numbers = #tpu.dot_dimension_numbers<[1], [0], [0], [1], [0, 0, 1, 1], [], []>} : vector<64x32xf32>, vector<32x64xf32>, vector<64x64xf32> -> vector<64x64xf32>
    %c3 = arith.constant 3 : index
    %c0_17 = arith.constant 0 : index
    %c0_18 = arith.constant 0 : index
    %30 = vector.load %arg4[%c3, %c0_17, %c0_18] : memref<4x64x64xf32, #tpu.memory_space<vmem>>, vector<1x64x64xf32>
    %31 = vector.shape_cast %30 : vector<1x64x64xf32> to vector<64x64xf32>
    %32 = vector.shape_cast %29 : vector<64x64xf32> to vector<1x64x64xf32>
    tpu.vector_store %arg4[%c3, %c0_17, %c0_18], %32 {strides = array<i32>} : memref<4x64x64xf32, #tpu.memory_space<vmem>>, vector<1x64x64xf32>,
    return
  }
  func.func @transform_0(%arg0: i32) -> (i32, i32, i32) {
    %c0_i32 = arith.constant 0 : i32
    %c0_i32_0 = arith.constant 0 : i32
    %c0_i32_1 = arith.constant 0 : i32
    return %arg0, %c0_i32, %c0_i32_0 : i32, i32, i32
  }
  func.func @transform_1(%arg0: i32) -> (i32, i32) {
    %c0_i32 = arith.constant 0 : i32
    %c0_i32_0 = arith.constant 0 : i32
    %c0_i32_1 = arith.constant 0 : i32
    return %c0_i32, %c0_i32_0 : i32, i32
  }
  func.func @transform_2(%arg0: i32) -> (i32, i32) {
    %c0_i32 = arith.constant 0 : i32
    %c0_i32_0 = arith.constant 0 : i32
    %c0_i32_1 = arith.constant 0 : i32
    return %c0_i32, %c0_i32_0 : i32, i32
  }
  func.func @transform_3(%arg0: i32) -> (i32, i32, i32) {
    %c0_i32 = arith.constant 0 : i32
    %c0_i32_0 = arith.constant 0 : i32
    %c0_i32_1 = arith.constant 0 : i32
    return %arg0, %c0_i32, %c0_i32_0 : i32, i32, i32
  }
}

</mosaic_0001>

<llo_original>
// kernel: mixupsample_2.1
$region0: #{mixupsample_2.1}
  #allocation0 [shape = 'u32[]', space=smem, size = 0x4, offset = 0x4, fixed_abs, tag = 'smem constant byte address 0x4 - core index']
  #allocation1 [shape = 'u32[144,128]{1,0:T(1,128)}', space=vmem, size = 0x12000, scoped, tag = 'internal scratch']
  %s0 = inlined_call_operand.vmem [shape: f32[8,16,16], index: 0, kind: input, shape index: {}]
  %s1 = inlined_call_operand.vmem [shape: f32[16,128], index: 1, kind: input, shape index: {}]
  %s2 = inlined_call_operand.vmem [shape: f32[64,32], index: 2, kind: input, shape index: {}]
  %s3 = inlined_call_operand.hbm [shape: f32[8,64,64], index: 3, kind: output, shape index: {}]
  %s4 = sld [smem:[#allocation0]]
  $region45: #{mixupsample_2.1} parent=0
    _
  %s6 = ssub.s32 1, %s4
  %s7 = scalar_select 0, %s6, %s4
  $region1: #{mixupsample_2.1} parent=0
    #allocation2 [shape = 'u8[262144]{0}', space=vmem, size = 0x40000, scoped, tag = 'output window, operand 0']
    #allocation3 [shape = 's32[2]{0}', space=sflag, size = 0x8, scoped, tag = 'scoped memory for mixupsample_2.1']
    %8 = vsyncpa [#allocation3], 0
    %s9 = scalar_lea.sflag [#allocation3], 1
    %10 = vsyncpa %s9, 0
    loop: start=0, step=1, limit=4
    $region2: #{mixupsample_2.1} parent=1 // loop_pre_header
      _
    $region3: #{mixupsample_2.1} parent=1 // loop_header
      %s12 = sphi 0, %s16
      %p13 = scmp.ge.s32.totalorder %s12, 4
      %s22 = sphi 0, %s24
      %s25 = sphi 0, %s22
      %s26 = sphi 0, %s25
      %s42 = sphi 0, %s26
      %s46 = sphi 0, %s46
      %s48 = sphi 0, %s46
      %s49 = sphi 0, %s48
      %s63 = sphi 0, %s49
      %s67 = sphi 0, %s67
      %s69 = sphi 0, %s67
      %s70 = sphi 0, %s69
      %s84 = sphi 0, %s70
      %s90 = sphi 0, %s92
      %s93 = sphi 0, %s90
      %s94 = sphi 0, %s93
      %s110 = sphi 0, %s94
    $region4: #{mixupsample_2.1} parent=1 // loop_header_branch
      %15 = sbr.rel (%p13) target = $region8
    $region5: #{mixupsample_2.1} parent=1 // loop_body
      %s17 = ssub.s32 %s12, 1
      %s18 = ssub.s32 %s12, 2
      %s19 = sadd.s32 %s12, 1
      %s20 = ssub.s32 %s12, %s19
      %p21 = scmp.eq.s32.totalorder %s20, 0
      %s23 = sadd.s32 %s22, 1
      %s24 = scalar_select %p21, %s22, %s23
      %p27 = pneg %p21
      %p28 = scmp.eq.s32.totalorder %s12, 1
      %p29 = por %p27, %p28
      %p30 = scmp.ne.s32.totalorder %s22, %s25
      %p31 = scmp.eq.s32.totalorder %s12, 0
      %p32 = por %p30, %p31
      %p33 = scmp.ne.s32.totalorder %s22, %s25
      %p34 = scmp.eq.s32.totalorder %s17, 1
      %p35 = por %p33, %p34
      %p36 = scmp.ne.s32.totalorder %s25, %s26
      %p37 = scmp.eq.s32.totalorder %s17, 0
      %p38 = por %p36, %p37
      %p39 = scmp.ne.s32.totalorder %s25, %s26
      %p40 = scmp.eq.s32.totalorder %s18, 1
      %p41 = por %p39, %p40
      %p43 = scmp.ne.s32.totalorder %s26, %s42
      %p44 = scmp.eq.s32.totalorder %s18, 0
      %p45 = por %p43, %p44
      %s47 = sadd.s32 %s46, 1
      %p50 = scmp.eq.s32.totalorder %s12, 1
      %p51 = scmp.ne.s32.totalorder %s46, %s48
      %p52 = scmp.eq.s32.totalorder %s12, 0
      %p53 = por %p51, %p52
      %p54 = scmp.ne.s32.totalorder %s46, %s48
      %p55 = scmp.eq.s32.totalorder %s17, 1
      %p56 = por %p54, %p55
      %p57 = scmp.ne.s32.totalorder %s48, %s49
      %p58 = scmp.eq.s32.totalorder %s17, 0
      %p59 = por %p57, %p58
      %p60 = scmp.ne.s32.totalorder %s48, %s49
      %p61 = scmp.eq.s32.totalorder %s18, 1
      %p62 = por %p60, %p61
      %p64 = scmp.ne.s32.totalorder %s49, %s63
      %p65 = scmp.eq.s32.totalorder %s18, 0
      %p66 = por %p64, %p65
      %s68 = sadd.s32 %s67, 1
      %p71 = scmp.eq.s32.totalorder %s12, 1
      %p72 = scmp.ne.s32.totalorder %s67, %s69
      %p73 = scmp.eq.s32.totalorder %s12, 0
      %p74 = por %p72, %p73
      %p75 = scmp.ne.s32.totalorder %s67, %s69
      %p76 = scmp.eq.s32.totalorder %s17, 1
      %p77 = por %p75, %p76
      %p78 = scmp.ne.s32.totalorder %s69, %s70
      %p79 = scmp.eq.s32.totalorder %s17, 0
      %p80 = por %p78, %p79
      %p81 = scmp.ne.s32.totalorder %s69, %s70
      %p82 = scmp.eq.s32.totalorder %s18, 1
      %p83 = por %p81, %p82
      %p85 = scmp.ne.s32.totalorder %s70, %s84
      %p86 = scmp.eq.s32.totalorder %s18, 0
      %p87 = por %p85, %p86
      %s88 = ssub.s32 %s12, %s19
      %p89 = scmp.eq.s32.totalorder %s88, 0
      %s91 = sadd.s32 %s90, 1
      %s92 = scalar_select %p89, %s90, %s91
      %p95 = pneg %p89
      %p96 = scmp.eq.s32.totalorder %s12, 1
      %p97 = por %p95, %p96
      %p98 = scmp.ne.s32.totalorder %s90, %s93
      %p99 = scmp.eq.s32.totalorder %s12, 0
      %p100 = por %p98, %p99
      %p101 = scmp.ne.s32.totalorder %s90, %s93
      %p102 = scmp.eq.s32.totalorder %s17, 1
      %p103 = por %p101, %p102
      %p104 = scmp.ne.s32.totalorder %s93, %s94
      %p105 = scmp.eq.s32.totalorder %s17, 0
      %p106 = por %p104, %p105
      %p107 = scmp.ne.s32.totalorder %s93, %s94
      %p108 = scmp.eq.s32.totalorder %s18, 1
      %p109 = por %p107, %p108
      %p111 = scmp.ne.s32.totalorder %s94, %s110
      %p112 = scmp.eq.s32.totalorder %s18, 0
      %p113 = por %p111, %p112
      %p114 = scmp.le.s32.totalorder 1, %s12
      %p115 = scmp.lt.s32.totalorder %s12, 3
      %p116 = pnand %p114, %p115
      %p117 = pneg %p116
      // Predicated region
      $region9: #{mixupsample_2.1} parent=5 // pred_check
        _
      $region10: #{mixupsample_2.1} parent=5 // pred_check_branch
        %119 = sbr.rel (%p116) target = $region12
      $region11: #{mixupsample_2.1} parent=5 // pred_region
        %s120 = ssub.s32 %s12, 1
        // Predicated region
        $region13: #{mixupsample_2.1} parent=11 // pred_check
          %p121 = pneg %p59
        $region14: #{mixupsample_2.1} parent=11 // pred_check_branch
          %123 = sbr.rel (%p121) target = $region16
        $region15: #{mixupsample_2.1} parent=11 // pred_region
          _
        $region16: #{mixupsample_2.1} parent=11 // pred_fallthru
          _
        // Predicated region
        $region17: #{mixupsample_2.1} parent=11 // pred_check
          %p124 = pneg %p80
        $region18: #{mixupsample_2.1} parent=11 // pred_check_branch
          %126 = sbr.rel (%p124) target = $region20
        $region19: #{mixupsample_2.1} parent=11 // pred_region
          _
        $region20: #{mixupsample_2.1} parent=11 // pred_fallthru
          _
      $region12: #{mixupsample_2.1} parent=5 // pred_fallthru
        _
      %p127 = scmp.lt.s32.totalorder %s12, 2
      // Predicated region
      $region21: #{mixupsample_2.1} parent=5 // pred_check
        %p128 = pneg %p127
      $region22: #{mixupsample_2.1} parent=5 // pred_check_branch
        %130 = sbr.rel (%p128) target = $region24
      $region23: #{mixupsample_2.1} parent=5 // pred_region
        // Predicated region
        $region25: #{mixupsample_2.1} parent=23 // pred_check
          %p131 = pneg %p32
        $region26: #{mixupsample_2.1} parent=23 // pred_check_branch
          %133 = sbr.rel (%p131) target = $region28
        $region27: #{mixupsample_2.1} parent=23 // pred_region
          %s134 = smul.u32 4, %s12
          %p135 = scmp.lt.s32.totalorder %s134, 7
          %s136 = scalar_select %p135, %s134, 7
          %s137 = smul.addr %s136, 2
          %s138 = smul.addr %s137, 8
          %s139 = scalar_lea.vmem %s0, %s138
          %s140 = smul.u32 4, %s12
        $region28: #{mixupsample_2.1} parent=23 // pred_fallthru
          _
      $region24: #{mixupsample_2.1} parent=5 // pred_fallthru
        _
      %p141 = scmp.le.s32.totalorder 1, %s12
      %p142 = scmp.lt.s32.totalorder %s12, 3
      %p143 = pnand %p141, %p142
      %p144 = pneg %p143
      // Predicated region
      $region29: #{mixupsample_2.1} parent=5 // pred_check
        _
      $region30: #{mixupsample_2.1} parent=5 // pred_check_branch
        %146 = sbr.rel (%p143) target = $region32
      $region31: #{mixupsample_2.1} parent=5 // pred_region
        %s147 = ssub.s32 %s12, 1
        %s148 = smul.u32 4, %s17
        %p149 = scmp.lt.s32.totalorder %s148, 7
        %s150 = scalar_select %p149, %s148, 7
        %s151 = smul.addr %s150, 2
        %s152 = smul.addr %s151, 8
        %s153 = scalar_lea.vmem %s0, %s152
        %p154 = pneg %p38
        %p155 = pneg %p35
        %p156 = pneg %p59
        %p157 = pneg %p56
        %p158 = pneg %p80
        %p159 = pneg %p77
        %p160 = pneg %p106
        %p161 = pneg %p103
        %s162 = sand.u32 %s93, 1
        %s163 = scalar_lea.sflag [#allocation3], %s162
        %s164 = sand.u32 %s93, 1
        %s165 = smul.addr %s164, 256
        %s166 = scalar_lea.vmem [#allocation2], %s165
        %s167 = smul.u32 4, %s17
        %p168 = scmp.lt.s32.totalorder %s167, 7
        %s169 = scalar_select %p168, %s167, 7
        %s170 = smul.addr %s169, 2
        %s171 = smul.addr %s170, 8
        %s172 = scalar_lea.vmem %s0, %s171
        %s173 = smul.u32 4, %s17
        %s174 = smul.u32 4, %s17
        %v175 = vld [vmem:[%s172] sm:$0xff]
        %v176 = vld [vmem:[%s172 + $0x8] sm:$0xff]
        %v177 = vld [vmem:[%s172 + $0x10] sm:$0xff]
        %v178 = vld [vmem:[%s172 + $0x18] sm:$0xff]
        %v179 = vld [vmem:[%s172 + $0x20] sm:$0xff]
        %v180 = vld [vmem:[%s172 + $0x28] sm:$0xff]
        %v181 = vld [vmem:[%s172 + $0x30] sm:$0xff]
        %v182 = vld [vmem:[%s172 + $0x38] sm:$0xff]
        %v183 = vld [vmem:[%s1] sm:$0xff]
        %v184 = vld [vmem:[%s1 + $0x8] sm:$0xff]
        %vm185 = vcmask 130048
        %v187 = vsel %vm185, %v175, 0
        %v190 = vsel %vm185, %v176, 0
        %v193 = vsel %vm185, %v177, 0
        %v196 = vsel %vm185, %v178, 0
        %v199 = vsel %vm185, %v179, 0
        %v202 = vsel %vm185, %v180, 0
        %v205 = vsel %vm185, %v181, 0
        %v208 = vsel %vm185, %v182, 0
        %210 = vmatprep.subr.mxu0 0.0
        %211 = vmatpush1.msra.mxu0 %v183
        %212 = vmatprep.subr.mxu0 0.0
        %213 = vmatpush1.msra.mxu0 %v184
        %214 = vmatprep.subr.mxu0 0.0
        %215 = vmatpush1.msra.mxu0 0.0
        %216 = vmatprep.subr.mxu0 0.0
        %217 = vmatpush1.msra.mxu0 0.0
        %218 = vmatprep.subr.mxu0 0.0
        %219 = vmatpush1.msra.mxu0 0.0
        %220 = vmatprep.subr.mxu0 0.0
        %221 = vmatpush1.msra.mxu0 0.0
        %222 = vmatprep.subr.mxu0 0.0
        %223 = vmatpush1.msra.mxu0 0.0
        %224 = vmatprep.subr.mxu0 0.0
        %225 = vmatpush1.msra.mxu0 0.0
        %226 = vmatprep.subr.mxu0 0.0
        %227 = vmatpush1.msra.mxu0 0.0
        %228 = vmatprep.subr.mxu0 0.0
        %229 = vmatpush1.msra.mxu0 0.0
        %230 = vmatprep.subr.mxu0 0.0
        %231 = vmatpush1.msra.mxu0 0.0
        %232 = vmatprep.subr.mxu0 0.0
        %233 = vmatpush1.msra.mxu0 0.0
        %234 = vmatprep.subr.mxu0 0.0
        %235 = vmatpush1.msra.mxu0 0.0
        %236 = vmatprep.subr.mxu0 0.0
        %237 = vmatpush1.msra.mxu0 0.0
        %238 = vmatprep.subr.mxu0 0.0
        %239 = vmatpush1.msra.mxu0 0.0
        %240 = vmatprep.subr.mxu0 0.0
        %241 = vmatpush1.msra.mxu0 0.0
        %242 = vmatprep.subr.mxu0 0.0
        %243 = vmatpush1.msra.mxu0 0.0
        %244 = vmatprep.subr.mxu0 0.0
        %245 = vmatpush1.msra.mxu0 0.0
        %246 = vmatprep.subr.mxu0 0.0
        %247 = vmatpush1.msra.mxu0 0.0
        %248 = vmatprep.subr.mxu0 0.0
        %249 = vmatpush1.msra.mxu0 0.0
        %250 = vmatprep.subr.mxu0 0.0
        %251 = vmatpush1.msra.mxu0 0.0
        %252 = vmatprep.subr.mxu0 0.0
        %253 = vmatpush1.msra.mxu0 0.0
        %254 = vmatprep.subr.mxu0 0.0
        %255 = vmatpush1.msra.mxu0 0.0
        %256 = vmatprep.subr.mxu0 0.0
        %257 = vmatpush1.msra.mxu0 0.0
        %258 = vmatprep.subr.mxu0 0.0
        %259 = vmatpush1.msra.mxu0 0.0
        %260 = vmatprep.subr.mxu0 0.0
        %261 = vmatpush1.msra.mxu0 0.0
        %262 = vmatprep.subr.mxu0 0.0
        %263 = vmatpush1.msra.mxu0 0.0
        %264 = vmatprep.subr.mxu0 0.0
        %265 = vmatpush1.msra.mxu0 0.0
        %266 = vmatprep.subr.mxu0 0.0
        %267 = vmatpush1.msra.mxu0 0.0
        %268 = vmatprep.subr.mxu0 0.0
        %269 = vmatpush1.msra.mxu0 0.0
        %270 = vmatprep.subr.mxu0 0.0
        %271 = vmatpush1.msra.mxu0 0.0
        %272 = vmatprep.subr.mxu0 0.0
        %273 = vmatpush1.msra.mxu0 0.0
        %274 = vmatprep.mubr.f32.mxu0 0.0
        %275 = vmatmul.mubr.f32.gmra.mrb[0].mxu0 %v187
        %v276 = vpop.f32.mrb[0].mxu0
        %v277 = vadd.f32 0.0, %v276
        %v278 = vpop.f32.mrb[0].mxu0
        %279 = vmatprep.mubr.f32.mxu0 0.0
        %280 = vmatmul.mubr.f32.gmra.mrb[0].mxu0 %v190
        %v281 = vpop.f32.mrb[0].mxu0
        %v282 = vadd.f32 0.0, %v281
        %v283 = vpop.f32.mrb[0].mxu0
        %284 = vmatprep.mubr.f32.mxu0 0.0
        %285 = vmatmul.mubr.f32.gmra.mrb[0].mxu0 %v193
        %v286 = vpop.f32.mrb[0].mxu0
        %v287 = vadd.f32 0.0, %v286
        %v288 = vpop.f32.mrb[0].mxu0
        %289 = vmatprep.mubr.f32.mxu0 0.0
        %290 = vmatmul.mubr.f32.gmra.mrb[0].mxu0 %v196
        %v291 = vpop.f32.mrb[0].mxu0
        %v292 = vadd.f32 0.0, %v291
        %v293 = vpop.f32.mrb[0].mxu0
        %294 = vmatprep.mubr.f32.mxu0 0.0
        %295 = vmatmul.mubr.f32.gmra.mrb[0].mxu0 %v199
        %v296 = vpop.f32.mrb[0].mxu0
        %v297 = vadd.f32 0.0, %v296
        %v298 = vpop.f32.mrb[0].mxu0
        %299 = vmatprep.mubr.f32.mxu0 0.0
        %300 = vmatmul.mubr.f32.gmra.mrb[0].mxu0 %v202
        %v301 = vpop.f32.mrb[0].mxu0
        %v302 = vadd.f32 0.0, %v301
        %v303 = vpop.f32.mrb[0].mxu0
        %304 = vmatprep.mubr.f32.mxu0 0.0
        %305 = vmatmul.mubr.f32.gmra.mrb[0].mxu0 %v205
        %v306 = vpop.f32.mrb[0].mxu0
        %v307 = vadd.f32 0.0, %v306
        %v308 = vpop.f32.mrb[0].mxu0
        %309 = vmatprep.mubr.f32.mxu0 0.0
        %310 = vmatmul.mubr.f32.gmra.mrb[0].mxu0 %v208
        %v311 = vpop.f32.mrb[0].mxu0
        %v312 = vadd.f32 0.0, %v311
        %v313 = vpop.f32.mrb[0].mxu0
        %314 = vdwg.mxu0
        %323 = vrot.lane.b32.xlu0 %v277, 64
        %v324 = vpop.permute.xlu0 %323
        %325 = vrot.lane.b32.xlu0 %v282, 64
        %v326 = vpop.permute.xlu0 %325
        %327 = vrot.lane.b32.xlu0 %v287, 64
        %v328 = vpop.permute.xlu0 %327
        %329 = vrot.lane.b32.xlu0 %v292, 64
        %v330 = vpop.permute.xlu0 %329
        %331 = vrot.lane.b32.xlu0 %v297, 64
        %v332 = vpop.permute.xlu0 %331
        %333 = vrot.lane.b32.xlu0 %v302, 64
        %v334 = vpop.permute.xlu0 %333
        %335 = vrot.lane.b32.xlu0 %v307, 64
        %v336 = vpop.permute.xlu0 %335
        %337 = vrot.lane.b32.xlu0 %v312, 64
        %v338 = vpop.permute.xlu0 %337
        %v347 = vld [vmem:[%s2] sm:$0xff]
        %v348 = vld [vmem:[%s2 + $0x8] sm:$0xff]
        %v349 = vld [vmem:[%s2 + $0x10] sm:$0xff]
        %v350 = vld [vmem:[%s2 + $0x18] sm:$0xff]
        %v351 = vld [vmem:[%s2 + $0x20] sm:$0xff]
        %v352 = vld [vmem:[%s2 + $0x28] sm:$0xff]
        %v353 = vld [vmem:[%s2 + $0x30] sm:$0xff]
        %v354 = vld [vmem:[%s2 + $0x38] sm:$0xff]
        %vm355 = vcmask 261120
        %v357 = vsel %vm355, %v347, 0
        %v360 = vsel %vm355, %v348, 0
        %v363 = vsel %vm355, %v349, 0
        %v366 = vsel %vm355, %v350, 0
        %v369 = vsel %vm355, %v351, 0
        %v372 = vsel %vm355, %v352, 0
        %v375 = vsel %vm355, %v353, 0
        %v378 = vsel %vm355, %v354, 0
        %380 = vmatprep.subr.mxu0 0.0
        %381 = vmatpush1.msra.mxu0 %v277
        %382 = vmatprep.subr.mxu0 0.0
        %383 = vmatpush1.msra.mxu0 %v282
        %384 = vmatprep.subr.mxu0 0.0
        %385 = vmatpush1.msra.mxu0 %v324
        %386 = vmatprep.subr.mxu0 0.0
        %387 = vmatpush1.msra.mxu0 %v326
        %388 = vmatprep.subr.mxu0 0.0
        %389 = vmatpush1.msra.mxu0 0.0
        %390 = vmatprep.subr.mxu0 0.0
        %391 = vmatpush1.msra.mxu0 0.0
        %392 = vmatprep.subr.mxu0 0.0
        %393 = vmatpush1.msra.mxu0 0.0
        %394 = vmatprep.subr.mxu0 0.0
        %395 = vmatpush1.msra.mxu0 0.0
        %396 = vmatprep.subr.mxu0 0.0
        %397 = vmatpush1.msra.mxu0 0.0
        %398 = vmatprep.subr.mxu0 0.0
        %399 = vmatpush1.msra.mxu0 0.0
        %400 = vmatprep.subr.mxu0 0.0
        %401 = vmatpush1.msra.mxu0 0.0
        %402 = vmatprep.subr.mxu0 0.0
        %403 = vmatpush1.msra.mxu0 0.0
        %404 = vmatprep.subr.mxu0 0.0
        %405 = vmatpush1.msra.mxu0 0.0
        %406 = vmatprep.subr.mxu0 0.0
        %407 = vmatpush1.msra.mxu0 0.0
        %408 = vmatprep.subr.mxu0 0.0
        %409 = vmatpush1.msra.mxu0 0.0
        %410 = vmatprep.subr.mxu0 0.0
        %411 = vmatpush1.msra.mxu0 0.0
        %412 = vmatprep.subr.mxu0 0.0
        %413 = vmatpush1.msra.mxu0 0.0
        %414 = vmatprep.subr.mxu0 0.0
        %415 = vmatpush1.msra.mxu0 0.0
        %416 = vmatprep.subr.mxu0 0.0
        %417 = vmatpush1.msra.mxu0 0.0
        %418 = vmatprep.subr.mxu0 0.0
        %419 = vmatpush1.msra.mxu0 0.0
        %420 = vmatprep.subr.mxu0 0.0
        %421 = vmatpush1.msra.mxu0 0.0
        %422 = vmatprep.subr.mxu0 0.0
        %423 = vmatpush1.msra.mxu0 0.0
        %424 = vmatprep.subr.mxu0 0.0
        %425 = vmatpush1.msra.mxu0 0.0
        %426 = vmatprep.subr.mxu0 0.0
        %427 = vmatpush1.msra.mxu0 0.0
        %428 = vmatprep.subr.mxu0 0.0
        %429 = vmatpush1.msra.mxu0 0.0
        %430 = vmatprep.subr.mxu0 0.0
        %431 = vmatpush1.msra.mxu0 0.0
        %432 = vmatprep.subr.mxu0 0.0
        %433 = vmatpush1.msra.mxu0 0.0
        %434 = vmatprep.subr.mxu0 0.0
        %435 = vmatpush1.msra.mxu0 0.0
        %436 = vmatprep.subr.mxu0 0.0
        %437 = vmatpush1.msra.mxu0 0.0
        %438 = vmatprep.subr.mxu0 0.0
        %439 = vmatpush1.msra.mxu0 0.0
        %440 = vmatprep.subr.mxu0 0.0
        %441 = vmatpush1.msra.mxu0 0.0
        %442 = vmatprep.subr.mxu0 0.0
        %443 = vmatpush1.msra.mxu0 0.0
        %444 = vmatprep.mubr.f32.mxu0 0.0
        %445 = vmatmul.mubr.f32.gmra.mrb[0].mxu0 %v357
        %v446 = vpop.f32.mrb[0].mxu0
        %v447 = vadd.f32 0.0, %v446
        %v448 = vpop.f32.mrb[0].mxu0
        %449 = vmatprep.mubr.f32.mxu0 0.0
        %450 = vmatmul.mubr.f32.gmra.mrb[0].mxu0 %v360
        %v451 = vpop.f32.mrb[0].mxu0
        %v452 = vadd.f32 0.0, %v451
        %v453 = vpop.f32.mrb[0].mxu0
        %454 = vmatprep.mubr.f32.mxu0 0.0
        %455 = vmatmul.mubr.f32.gmra.mrb[0].mxu0 %v363
        %v456 = vpop.f32.mrb[0].mxu0
        %v457 = vadd.f32 0.0, %v456
        %v458 = vpop.f32.mrb[0].mxu0
        %459 = vmatprep.mubr.f32.mxu0 0.0
        %460 = vmatmul.mubr.f32.gmra.mrb[0].mxu0 %v366
        %v461 = vpop.f32.mrb[0].mxu0
        %v462 = vadd.f32 0.0, %v461
        %v463 = vpop.f32.mrb[0].mxu0
        %464 = vmatprep.mubr.f32.mxu0 0.0
        %465 = vmatmul.mubr.f32.gmra.mrb[0].mxu0 %v369
        %v466 = vpop.f32.mrb[0].mxu0
        %v467 = vadd.f32 0.0, %v466
        %v468 = vpop.f32.mrb[0].mxu0
        %469 = vmatprep.mubr.f32.mxu0 0.0
        %470 = vmatmul.mubr.f32.gmra.mrb[0].mxu0 %v372
        %v471 = vpop.f32.mrb[0].mxu0
        %v472 = vadd.f32 0.0, %v471
        %v473 = vpop.f32.mrb[0].mxu0
        %474 = vmatprep.mubr.f32.mxu0 0.0
        %475 = vmatmul.mubr.f32.gmra.mrb[0].mxu0 %v375
        %v476 = vpop.f32.mrb[0].mxu0
        %v477 = vadd.f32 0.0, %v476
        %v478 = vpop.f32.mrb[0].mxu0
        %479 = vmatprep.mubr.f32.mxu0 0.0
        %480 = vmatmul.mubr.f32.gmra.mrb[0].mxu0 %v378
        %v481 = vpop.f32.mrb[0].mxu0
        %v482 = vadd.f32 0.0, %v481
        %v483 = vpop.f32.mrb[0].mxu0
        %484 = vdwg.mxu0
        %vm485 = vcmask 523264
        %486 = vst.msk [vmem:[%s166] sm:$0xff] %vm485, %v447
        %487 = vst.msk [vmem:[%s166 + $0x8] sm:$0xff] %vm485, %v452
        %488 = vst.msk [vmem:[%s166 + $0x10] sm:$0xff] %vm485, %v457
        %489 = vst.msk [vmem:[%s166 + $0x18] sm:$0xff] %vm485, %v462
        %490 = vst.msk [vmem:[%s166 + $0x20] sm:$0xff] %vm485, %v467
        %491 = vst.msk [vmem:[%s166 + $0x28] sm:$0xff] %vm485, %v472
        %492 = vst.msk [vmem:[%s166 + $0x30] sm:$0xff] %vm485, %v477
        %493 = vst.msk [vmem:[%s166 + $0x38] sm:$0xff] %vm485, %v482
        %494 = vmatprep.subr.mxu0 0.0
        %495 = vmatpush1.msra.mxu0 %v287
        %496 = vmatprep.subr.mxu0 0.0
        %497 = vmatpush1.msra.mxu0 %v292
        %498 = vmatprep.subr.mxu0 0.0
        %499 = vmatpush1.msra.mxu0 %v328
        %500 = vmatprep.subr.mxu0 0.0
        %501 = vmatpush1.msra.mxu0 %v330
        %502 = vmatprep.subr.mxu0 0.0
        %503 = vmatpush1.msra.mxu0 0.0
        %504 = vmatprep.subr.mxu0 0.0
        %505 = vmatpush1.msra.mxu0 0.0
        %506 = vmatprep.subr.mxu0 0.0
        %507 = vmatpush1.msra.mxu0 0.0
        %508 = vmatprep.subr.mxu0 0.0
        %509 = vmatpush1.msra.mxu0 0.0
        %510 = vmatprep.subr.mxu0 0.0
        %511 = vmatpush1.msra.mxu0 0.0
        %512 = vmatprep.subr.mxu0 0.0
        %513 = vmatpush1.msra.mxu0 0.0
        %514 = vmatprep.subr.mxu0 0.0
        %515 = vmatpush1.msra.mxu0 0.0
        %516 = vmatprep.subr.mxu0 0.0
        %517 = vmatpush1.msra.mxu0 0.0
        %518 = vmatprep.subr.mxu0 0.0
        %519 = vmatpush1.msra.mxu0 0.0
        %520 = vmatprep.subr.mxu0 0.0
        %521 = vmatpush1.msra.mxu0 0.0
        %522 = vmatprep.subr.mxu0 0.0
        %523 = vmatpush1.msra.mxu0 0.0
        %524 = vmatprep.subr.mxu0 0.0
        %525 = vmatpush1.msra.mxu0 0.0
        %526 = vmatprep.subr.mxu0 0.0
        %527 = vmatpush1.msra.mxu0 0.0
        %528 = vmatprep.subr.mxu0 0.0
        %529 = vmatpush1.msra.mxu0 0.0
        %530 = vmatprep.subr.mxu0 0.0
        %531 = vmatpush1.msra.mxu0 0.0
        %532 = vmatprep.subr.mxu0 0.0
        %533 = vmatpush1.msra.mxu0 0.0
        %534 = vmatprep.subr.mxu0 0.0
        %535 = vmatpush1.msra.mxu0 0.0
        %536 = vmatprep.subr.mxu0 0.0
        %537 = vmatpush1.msra.mxu0 0.0
        %538 = vmatprep.subr.mxu0 0.0
        %539 = vmatpush1.msra.mxu0 0.0
        %540 = vmatprep.subr.mxu0 0.0
        %541 = vmatpush1.msra.mxu0 0.0
        %542 = vmatprep.subr.mxu0 0.0
        %543 = vmatpush1.msra.mxu0 0.0
        %544 = vmatprep.subr.mxu0 0.0
        %545 = vmatpush1.msra.mxu0 0.0
        %546 = vmatprep.subr.mxu0 0.0
        %547 = vmatpush1.msra.mxu0 0.0
        %548 = vmatprep.subr.mxu0 0.0
        %549 = vmatpush1.msra.mxu0 0.0
        %550 = vmatprep.subr.mxu0 0.0
        %551 = vmatpush1.msra.mxu0 0.0
        %552 = vmatprep.subr.mxu0 0.0
        %553 = vmatpush1.msra.mxu0 0.0
        %554 = vmatprep.subr.mxu0 0.0
        %555 = vmatpush1.msra.mxu0 0.0
        %556 = vmatprep.subr.mxu0 0.0
        %557 = vmatpush1.msra.mxu0 0.0
        %558 = vmatprep.mubr.f32.mxu0 0.0
        %559 = vmatmul.mubr.f32.gmra.mrb[0].mxu0 %v357
        %v560 = vpop.f32.mrb[0].mxu0
        %v561 = vadd.f32 0.0, %v560
        %v562 = vpop.f32.mrb[0].mxu0
        %563 = vmatprep.mubr.f32.mxu0 0.0
        %564 = vmatmul.mubr.f32.gmra.mrb[0].mxu0 %v360
        %v565 = vpop.f32.mrb[0].mxu0
        %v566 = vadd.f32 0.0, %v565
        %v567 = vpop.f32.mrb[0].mxu0
        %568 = vmatprep.mubr.f32.mxu0 0.0
        %569 = vmatmul.mubr.f32.gmra.mrb[0].mxu0 %v363
        %v570 = vpop.f32.mrb[0].mxu0
        %v571 = vadd.f32 0.0, %v570
        %v572 = vpop.f32.mrb[0].mxu0
        %573 = vmatprep.mubr.f32.mxu0 0.0
        %574 = vmatmul.mubr.f32.gmra.mrb[0].mxu0 %v366
        %v575 = vpop.f32.mrb[0].mxu0
        %v576 = vadd.f32 0.0, %v575
        %v577 = vpop.f32.mrb[0].mxu0
        %578 = vmatprep.mubr.f32.mxu0 0.0
        %579 = vmatmul.mubr.f32.gmra.mrb[0].mxu0 %v369
        %v580 = vpop.f32.mrb[0].mxu0
        %v581 = vadd.f32 0.0, %v580
        %v582 = vpop.f32.mrb[0].mxu0
        %583 = vmatprep.mubr.f32.mxu0 0.0
        %584 = vmatmul.mubr.f32.gmra.mrb[0].mxu0 %v372
        %v585 = vpop.f32.mrb[0].mxu0
        %v586 = vadd.f32 0.0, %v585
        %v587 = vpop.f32.mrb[0].mxu0
        %588 = vmatprep.mubr.f32.mxu0 0.0
        %589 = vmatmul.mubr.f32.gmra.mrb[0].mxu0 %v375
        %v590 = vpop.f32.mrb[0].mxu0
        %v591 = vadd.f32 0.0, %v590
        %v592 = vpop.f32.mrb[0].mxu0
        %593 = vmatprep.mubr.f32.mxu0 0.0
        %594 = vmatmul.mubr.f32.gmra.mrb[0].mxu0 %v378
        %v595 = vpop.f32.mrb[0].mxu0
        %v596 = vadd.f32 0.0, %v595
        %v597 = vpop.f32.mrb[0].mxu0
        %598 = vdwg.mxu0
        %s599 = scalar_lea.vmem %s166, 64 [#allocation2]
        %600 = vst.msk [vmem:[%s599] sm:$0xff] %vm485, %v561
        %601 = vst.msk [vmem:[%s599 + $0x8] sm:$0xff] %vm485, %v566
        %602 = vst.msk [vmem:[%s599 + $0x10] sm:$0xff] %vm485, %v571
        %603 = vst.msk [vmem:[%s599 + $0x18] sm:$0xff] %vm485, %v576
        %604 = vst.msk [vmem:[%s599 + $0x20] sm:$0xff] %vm485, %v581
        %605 = vst.msk [vmem:[%s599 + $0x28] sm:$0xff] %vm485, %v586
        %606 = vst.msk [vmem:[%s599 + $0x30] sm:$0xff] %vm485, %v591
        %607 = vst.msk [vmem:[%s599 + $0x38] sm:$0xff] %vm485, %v596
        %608 = vmatprep.subr.mxu0 0.0
        %609 = vmatpush1.msra.mxu0 %v297
        %610 = vmatprep.subr.mxu0 0.0
        %611 = vmatpush1.msra.mxu0 %v302
        %612 = vmatprep.subr.mxu0 0.0
        %613 = vmatpush1.msra.mxu0 %v332
        %614 = vmatprep.subr.mxu0 0.0
        %615 = vmatpush1.msra.mxu0 %v334
        %616 = vmatprep.subr.mxu0 0.0
        %617 = vmatpush1.msra.mxu0 0.0
        %618 = vmatprep.subr.mxu0 0.0
        %619 = vmatpush1.msra.mxu0 0.0
        %620 = vmatprep.subr.mxu0 0.0
        %621 = vmatpush1.msra.mxu0 0.0
        %622 = vmatprep.subr.mxu0 0.0
        %623 = vmatpush1.msra.mxu0 0.0
        %624 = vmatprep.subr.mxu0 0.0
        %625 = vmatpush1.msra.mxu0 0.0
        %626 = vmatprep.subr.mxu0 0.0
        %627 = vmatpush1.msra.mxu0 0.0
        %628 = vmatprep.subr.mxu0 0.0
        %629 = vmatpush1.msra.mxu0 0.0
        %630 = vmatprep.subr.mxu0 0.0
        %631 = vmatpush1.msra.mxu0 0.0
        %632 = vmatprep.subr.mxu0 0.0
        %633 = vmatpush1.msra.mxu0 0.0
        %634 = vmatprep.subr.mxu0 0.0
        %635 = vmatpush1.msra.mxu0 0.0
        %636 = vmatprep.subr.mxu0 0.0
        %637 = vmatpush1.msra.mxu0 0.0
        %638 = vmatprep.subr.mxu0 0.0
        %639 = vmatpush1.msra.mxu0 0.0
        %640 = vmatprep.subr.mxu0 0.0
        %641 = vmatpush1.msra.mxu0 0.0
        %642 = vmatprep.subr.mxu0 0.0
        %643 = vmatpush1.msra.mxu0 0.0
        %644 = vmatprep.subr.mxu0 0.0
        %645 = vmatpush1.msra.mxu0 0.0
        %646 = vmatprep.subr.mxu0 0.0
        %647 = vmatpush1.msra.mxu0 0.0
        %648 = vmatprep.subr.mxu0 0.0
        %649 = vmatpush1.msra.mxu0 0.0
        %650 = vmatprep.subr.mxu0 0.0
        %651 = vmatpush1.msra.mxu0 0.0
        %652 = vmatprep.subr.mxu0 0.0
        %653 = vmatpush1.msra.mxu0 0.0
        %654 = vmatprep.subr.mxu0 0.0
        %655 = vmatpush1.msra.mxu0 0.0
        %656 = vmatprep.subr.mxu0 0.0
        %657 = vmatpush1.msra.mxu0 0.0
        %658 = vmatprep.subr.mxu0 0.0
        %659 = vmatpush1.msra.mxu0 0.0
        %660 = vmatprep.subr.mxu0 0.0
        %661 = vmatpush1.msra.mxu0 0.0
        %662 = vmatprep.subr.mxu0 0.0
        %663 = vmatpush1.msra.mxu0 0.0
        %664 = vmatprep.subr.mxu0 0.0
        %665 = vmatpush1.msra.mxu0 0.0
        %666 = vmatprep.subr.mxu0 0.0
        %667 = vmatpush1.msra.mxu0 0.0
        %668 = vmatprep.subr.mxu0 0.0
        %669 = vmatpush1.msra.mxu0 0.0
        %670 = vmatprep.subr.mxu0 0.0
        %671 = vmatpush1.msra.mxu0 0.0
        %672 = vmatprep.mubr.f32.mxu0 0.0
        %673 = vmatmul.mubr.f32.gmra.mrb[0].mxu0 %v357
        %v674 = vpop.f32.mrb[0].mxu0
        %v675 = vadd.f32 0.0, %v674
        %v676 = vpop.f32.mrb[0].mxu0
        %677 = vmatprep.mubr.f32.mxu0 0.0
        %678 = vmatmul.mubr.f32.gmra.mrb[0].mxu0 %v360
        %v679 = vpop.f32.mrb[0].mxu0
        %v680 = vadd.f32 0.0, %v679
        %v681 = vpop.f32.mrb[0].mxu0
        %682 = vmatprep.mubr.f32.mxu0 0.0
        %683 = vmatmul.mubr.f32.gmra.mrb[0].mxu0 %v363
        %v684 = vpop.f32.mrb[0].mxu0
        %v685 = vadd.f32 0.0, %v684
        %v686 = vpop.f32.mrb[0].mxu0
        %687 = vmatprep.mubr.f32.mxu0 0.0
        %688 = vmatmul.mubr.f32.gmra.mrb[0].mxu0 %v366
        %v689 = vpop.f32.mrb[0].mxu0
        %v690 = vadd.f32 0.0, %v689
        %v691 = vpop.f32.mrb[0].mxu0
        %692 = vmatprep.mubr.f32.mxu0 0.0
        %693 = vmatmul.mubr.f32.gmra.mrb[0].mxu0 %v369
        %v694 = vpop.f32.mrb[0].mxu0
        %v695 = vadd.f32 0.0, %v694
        %v696 = vpop.f32.mrb[0].mxu0
        %697 = vmatprep.mubr.f32.mxu0 0.0
        %698 = vmatmul.mubr.f32.gmra.mrb[0].mxu0 %v372
        %v699 = vpop.f32.mrb[0].mxu0
        %v700 = vadd.f32 0.0, %v699
        %v701 = vpop.f32.mrb[0].mxu0
        %702 = vmatprep.mubr.f32.mxu0 0.0
        %703 = vmatmul.mubr.f32.gmra.mrb[0].mxu0 %v375
        %v704 = vpop.f32.mrb[0].mxu0
        %v705 = vadd.f32 0.0, %v704
        %v706 = vpop.f32.mrb[0].mxu0
        %707 = vmatprep.mubr.f32.mxu0 0.0
        %708 = vmatmul.mubr.f32.gmra.mrb[0].mxu0 %v378
        %v709 = vpop.f32.mrb[0].mxu0
        %v710 = vadd.f32 0.0, %v709
        %v711 = vpop.f32.mrb[0].mxu0
        %712 = vdwg.mxu0
        %s713 = scalar_lea.vmem %s166, 128 [#allocation2]
        %714 = vst.msk [vmem:[%s713] sm:$0xff] %vm485, %v675
        %715 = vst.msk [vmem:[%s713 + $0x8] sm:$0xff] %vm485, %v680
        %716 = vst.msk [vmem:[%s713 + $0x10] sm:$0xff] %vm485, %v685
        %717 = vst.msk [vmem:[%s713 + $0x18] sm:$0xff] %vm485, %v690
        %718 = vst.msk [vmem:[%s713 + $0x20] sm:$0xff] %vm485, %v695
        %719 = vst.msk [vmem:[%s713 + $0x28] sm:$0xff] %vm485, %v700
        %720 = vst.msk [vmem:[%s713 + $0x30] sm:$0xff] %vm485, %v705
        %721 = vst.msk [vmem:[%s713 + $0x38] sm:$0xff] %vm485, %v710
        %722 = vmatprep.subr.mxu0 0.0
        %723 = vmatpush1.msra.mxu0 %v307
        %724 = vmatprep.subr.mxu0 0.0
        %725 = vmatpush1.msra.mxu0 %v312
        %726 = vmatprep.subr.mxu0 0.0
        %727 = vmatpush1.msra.mxu0 %v336
        %728 = vmatprep.subr.mxu0 0.0
        %729 = vmatpush1.msra.mxu0 %v338
        %730 = vmatprep.subr.mxu0 0.0
        %731 = vmatpush1.msra.mxu0 0.0
        %732 = vmatprep.subr.mxu0 0.0
        %733 = vmatpush1.msra.mxu0 0.0
        %734 = vmatprep.subr.mxu0 0.0
        %735 = vmatpush1.msra.mxu0 0.0
        %736 = vmatprep.subr.mxu0 0.0
        %737 = vmatpush1.msra.mxu0 0.0
        %738 = vmatprep.subr.mxu0 0.0
        %739 = vmatpush1.msra.mxu0 0.0
        %740 = vmatprep.subr.mxu0 0.0
        %741 = vmatpush1.msra.mxu0 0.0
        %742 = vmatprep.subr.mxu0 0.0
        %743 = vmatpush1.msra.mxu0 0.0
        %744 = vmatprep.subr.mxu0 0.0
        %745 = vmatpush1.msra.mxu0 0.0
        %746 = vmatprep.subr.mxu0 0.0
        %747 = vmatpush1.msra.mxu0 0.0
        %748 = vmatprep.subr.mxu0 0.0
        %749 = vmatpush1.msra.mxu0 0.0
        %750 = vmatprep.subr.mxu0 0.0
        %751 = vmatpush1.msra.mxu0 0.0
        %752 = vmatprep.subr.mxu0 0.0
        %753 = vmatpush1.msra.mxu0 0.0
        %754 = vmatprep.subr.mxu0 0.0
        %755 = vmatpush1.msra.mxu0 0.0
        %756 = vmatprep.subr.mxu0 0.0
        %757 = vmatpush1.msra.mxu0 0.0
        %758 = vmatprep.subr.mxu0 0.0
        %759 = vmatpush1.msra.mxu0 0.0
        %760 = vmatprep.subr.mxu0 0.0
        %761 = vmatpush1.msra.mxu0 0.0
        %762 = vmatprep.subr.mxu0 0.0
        %763 = vmatpush1.msra.mxu0 0.0
        %764 = vmatprep.subr.mxu0 0.0
        %765 = vmatpush1.msra.mxu0 0.0
        %766 = vmatprep.subr.mxu0 0.0
        %767 = vmatpush1.msra.mxu0 0.0
        %768 = vmatprep.subr.mxu0 0.0
        %769 = vmatpush1.msra.mxu0 0.0
        %770 = vmatprep.subr.mxu0 0.0
        %771 = vmatpush1.msra.mxu0 0.0
        %772 = vmatprep.subr.mxu0 0.0
        %773 = vmatpush1.msra.mxu0 0.0
        %774 = vmatprep.subr.mxu0 0.0
        %775 = vmatpush1.msra.mxu0 0.0
        %776 = vmatprep.subr.mxu0 0.0
        %777 = vmatpush1.msra.mxu0 0.0
        %778 = vmatprep.subr.mxu0 0.0
        %779 = vmatpush1.msra.mxu0 0.0
        %780 = vmatprep.subr.mxu0 0.0
        %781 = vmatpush1.msra.mxu0 0.0
        %782 = vmatprep.subr.mxu0 0.0
        %783 = vmatpush1.msra.mxu0 0.0
        %784 = vmatprep.subr.mxu0 0.0
        %785 = vmatpush1.msra.mxu0 0.0
        %786 = vmatprep.mubr.f32.mxu0 0.0
        %787 = vmatmul.mubr.f32.gmra.mrb[0].mxu0 %v357
        %v788 = vpop.f32.mrb[0].mxu0
        %v789 = vadd.f32 0.0, %v788
        %v790 = vpop.f32.mrb[0].mxu0
        %791 = vmatprep.mubr.f32.mxu0 0.0
        %792 = vmatmul.mubr.f32.gmra.mrb[0].mxu0 %v360
        %v793 = vpop.f32.mrb[0].mxu0
        %v794 = vadd.f32 0.0, %v793
        %v795 = vpop.f32.mrb[0].mxu0
        %796 = vmatprep.mubr.f32.mxu0 0.0
        %797 = vmatmul.mubr.f32.gmra.mrb[0].mxu0 %v363
        %v798 = vpop.f32.mrb[0].mxu0
        %v799 = vadd.f32 0.0, %v798
        %v800 = vpop.f32.mrb[0].mxu0
        %801 = vmatprep.mubr.f32.mxu0 0.0
        %802 = vmatmul.mubr.f32.gmra.mrb[0].mxu0 %v366
        %v803 = vpop.f32.mrb[0].mxu0
        %v804 = vadd.f32 0.0, %v803
        %v805 = vpop.f32.mrb[0].mxu0
        %806 = vmatprep.mubr.f32.mxu0 0.0
        %807 = vmatmul.mubr.f32.gmra.mrb[0].mxu0 %v369
        %v808 = vpop.f32.mrb[0].mxu0
        %v809 = vadd.f32 0.0, %v808
        %v810 = vpop.f32.mrb[0].mxu0
        %811 = vmatprep.mubr.f32.mxu0 0.0
        %812 = vmatmul.mubr.f32.gmra.mrb[0].mxu0 %v372
        %v813 = vpop.f32.mrb[0].mxu0
        %v814 = vadd.f32 0.0, %v813
        %v815 = vpop.f32.mrb[0].mxu0
        %816 = vmatprep.mubr.f32.mxu0 0.0
        %817 = vmatmul.mubr.f32.gmra.mrb[0].mxu0 %v375
        %v818 = vpop.f32.mrb[0].mxu0
        %v819 = vadd.f32 0.0, %v818
        %v820 = vpop.f32.mrb[0].mxu0
        %821 = vmatprep.mubr.f32.mxu0 0.0
        %822 = vmatmul.mubr.f32.gmra.mrb[0].mxu0 %v378
        %v823 = vpop.f32.mrb[0].mxu0
        %v824 = vadd.f32 0.0, %v823
        %v825 = vpop.f32.mrb[0].mxu0
        %826 = vdwg.mxu0
        %s827 = scalar_lea.vmem %s166, 192 [#allocation2]
        %828 = vst.msk [vmem:[%s827] sm:$0xff] %vm485, %v789
        %829 = vst.msk [vmem:[%s827 + $0x8] sm:$0xff] %vm485, %v794
        %830 = vst.msk [vmem:[%s827 + $0x10] sm:$0xff] %vm485, %v799
        %831 = vst.msk [vmem:[%s827 + $0x18] sm:$0xff] %vm485, %v804
        %832 = vst.msk [vmem:[%s827 + $0x20] sm:$0xff] %vm485, %v809
        %833 = vst.msk [vmem:[%s827 + $0x28] sm:$0xff] %vm485, %v814
        %834 = vst.msk [vmem:[%s827 + $0x30] sm:$0xff] %vm485, %v819
        %835 = vst.msk [vmem:[%s827 + $0x38] sm:$0xff] %vm485, %v824
        %s836 = sand.u32 %s93, 1
        %s837 = scalar_lea.sflag [#allocation3], %s836
        %s838 = sand.u32 %s93, 1
        %s839 = smul.addr %s838, 256
        %s840 = scalar_lea.vmem [#allocation2], %s839
        // Predicated region
        $region33: #{mixupsample_2.1} parent=31 // pred_check
          %p841 = pneg %p103
        $region34: #{mixupsample_2.1} parent=31 // pred_check_branch
          %843 = sbr.rel (%p841) target = $region36
        $region35: #{mixupsample_2.1} parent=31 // pred_region
          %s844 = smul.u32 4, %s17
          %s846 = ssub.s32 4096, 4096
          %847 = vsyncadd %s837, %s846
          %s848 = smul.addr %s844, 8
          %s849 = smul.addr %s848, 128
          %s850 = scalar_lea.hbm %s3, %s849
          %s851 = sshll.u32 %s840, 4
          %s852 = int_to_ptr.vmem [resolvable:$true] %s851
          %857 = dma.vmem_to_hbm [thread:$0]  %s852, 4096, %s850, %s837, 128, 128, 8
        $region36: #{mixupsample_2.1} parent=31 // pred_fallthru
          _
      $region32: #{mixupsample_2.1} parent=5 // pred_fallthru
        _
      %p858 = scmp.le.s32.totalorder 2, %s12
      // Predicated region
      $region37: #{mixupsample_2.1} parent=5 // pred_check
        %p859 = pneg %p858
      $region38: #{mixupsample_2.1} parent=5 // pred_check_branch
        %861 = sbr.rel (%p859) target = $region40
      $region39: #{mixupsample_2.1} parent=5 // pred_region
        %s862 = ssub.s32 %s12, 2
        // Predicated region
        $region41: #{mixupsample_2.1} parent=39 // pred_check
          %p863 = pneg %p109
        $region42: #{mixupsample_2.1} parent=39 // pred_check_branch
          %865 = sbr.rel (%p863) target = $region44
        $region43: #{mixupsample_2.1} parent=39 // pred_region
          %s866 = sand.u32 %s94, 1
          %s867 = scalar_lea.sflag [#allocation3], %s866
          %s868 = sand.u32 %s94, 1
          %s869 = smul.addr %s868, 256
          %s870 = scalar_lea.vmem [#allocation2], %s869
          %871 = dma.done %s867, 4096
        $region44: #{mixupsample_2.1} parent=39 // pred_fallthru
          _
      $region40: #{mixupsample_2.1} parent=5 // pred_fallthru
        _
    $region6: #{mixupsample_2.1} parent=1 // loop_footer
      %s16 = sadd.s32 1, %s12
    $region7: #{mixupsample_2.1} parent=1 // loop_footer_branch
      %11 = sbr.rel target = $region3
    $region8: #{mixupsample_2.1} parent=1 // loop_exit
      _
    %872 = vsyncpa [#allocation3], 1
    %s873 = scalar_lea.sflag [#allocation3], 1
    %874 = vsyncpa %s873, 1

</llo_original>
